<compile_context>
chip_gen: v7x
topology: tpu7x:2x2x1
jax: 0.10.0
libtpu: 0.0.40
codegen_flags: <defaults>
</compile_context>

<pallas_src>
import functools

import jax
import jax.numpy as jnp
from jax.experimental import pallas as pl
from jax.experimental.pallas import tpu as pltpu


# ----------------------------------------------------------------------------
# Generation-aware tiling helpers
# ----------------------------------------------------------------------------

def _round_up(n, m):
    return ((n + m - 1) // m) * m


def _vmem_capacity_bytes():
    """Physical VMEM per core; falls back to 128 MiB when no TPU is attached."""
    try:
        return int(pltpu.get_tpu_info().vmem_capacity_bytes)
    except Exception:
        return 128 * 1024 * 1024


def _vmem_limit_bytes():
    # Scoped limit: half of physical, capped at 64 MiB.
    # v5e/v6e (128 MiB) -> 64 MiB ; v7x (64 MiB) -> 32 MiB.
    return min(_vmem_capacity_bytes() // 2, 64 * 1024 * 1024)


def _pick_row_tile(n_rows, d, *, itemsize=4, max_tile=2048):
    """Largest row tile (multiple of 8) such that the residual kernel's worst
    case (3 streams x 2 buffers) stays well inside the scoped VMEM limit."""
    block_budget = _vmem_limit_bytes() // 8          # per double-buffered block
    tm = max(8, block_budget // max(1, d * itemsize))
    tm = min(tm, max_tile, _round_up(n_rows, 8))
    return max(8, (tm // 8) * 8)


# ----------------------------------------------------------------------------
# Kernel 1: LayerNormalisation (scalar alpha / bias, unbiased std, eps on std)
# ----------------------------------------------------------------------------

def _layernorm_kernel(params_ref, x_ref, o_ref, *, d_model, epsilon):
    # params_ref lives in SMEM (scalar prefetch): [alpha, bias].
    x = x_ref[...].astype(jnp.float32)
    mean = jnp.mean(x, axis=-1, keepdims=True)
    centered = x - mean
    # torch.Tensor.std defaults to the unbiased estimator (ddof = 1).
    denom = max(d_model - 1, 1)                      # guard d_model == 1
    var = jnp.sum(centered * centered, axis=-1, keepdims=True) * (1.0 / denom)
    std = jnp.sqrt(var)
    # One divide per row (tm,1), then a broadcast multiply over (tm,d).
    scale = params_ref[0] / (std + epsilon)
    o_ref[...] = (centered * scale + params_ref[1]).astype(o_ref.dtype)


def layer_normalisation(x, alpha, bias, *, epsilon=1e-6, row_tile=None,
                        out_dtype=jnp.float32):
    orig_shape = x.shape
    d = orig_shape[-1]
    x2d = x.reshape(-1, d)                           # no dtype cast: stream native
    n = x2d.shape[0]
    itemsize = max(jnp.dtype(x.dtype).itemsize, jnp.dtype(out_dtype).itemsize)
    tm = row_tile or _pick_row_tile(n, d, itemsize=itemsize)

    params = jnp.stack([jnp.asarray(alpha, jnp.float32).reshape(()),
                        jnp.asarray(bias, jnp.float32).reshape(())])

    out = pl.pallas_call(
        functools.partial(_layernorm_kernel, d_model=d, epsilon=float(epsilon)),
        out_shape=jax.ShapeDtypeStruct((n, d), out_dtype),
        grid_spec=pltpu.PrefetchScalarGridSpec(
            num_scalar_prefetch=1,                   # alpha/bias -> SMEM
            grid=(pl.cdiv(n, tm),),
            in_specs=[pl.BlockSpec((tm, d), lambda i, p: (i, 0))],
            out_specs=pl.BlockSpec((tm, d), lambda i, p: (i, 0)),
        ),
        compiler_params=pltpu.CompilerParams(
            dimension_semantics=("parallel",),
            vmem_limit_bytes=_vmem_limit_bytes()),
    )(params, x2d)
    return out.reshape(orig_shape)


# ----------------------------------------------------------------------------
# Kernel 2: dropout + residual add
# ----------------------------------------------------------------------------

def _residual_add_kernel(x_ref, y_ref, o_ref):
    o_ref[...] = (x_ref[...].astype(jnp.float32)
                  + y_ref[...].astype(jnp.float32)).astype(o_ref.dtype)


def _residual_dropout_kernel(seed_ref, x_ref, y_ref, o_ref, *,
                             threshold, scale, d_total):
    tm, d = x_ref.shape
    x = x_ref[...].astype(jnp.float32)
    y = y_ref[...].astype(jnp.float32)

    # Counter-based RNG: hash the *global* element index with the seed.
    # Deterministic, independent of row_tile / grid sharding, and lowers on
    # every backend (plain uint32 VPU ops; no pltpu.prng_* needed).
    row0 = (pl.program_id(0) * tm).astype(jnp.uint32)
    rows = jax.lax.broadcasted_iota(jnp.int32, (tm, d), 0).astype(jnp.uint32) + row0
    cols = jax.lax.broadcasted_iota(jnp.int32, (tm, d), 1).astype(jnp.uint32)
    idx = rows * jnp.uint32(d_total) + cols

    seed_u32 = seed_ref[0].astype(jnp.uint32)
    h = idx ^ (seed_u32 * jnp.uint32(0x9E3779B9))
    # lowbias32 finalizer (good uniformity on consecutive counters).
    h = h ^ (h >> 16)
    h = h * jnp.uint32(0x7FEB352D)
    h = h ^ (h >> 15)
    h = h * jnp.uint32(0x846CA68B)
    h = h ^ (h >> 16)

    keep = h >= jnp.uint32(threshold)                # P(keep) = 1 - rate
    o_ref[...] = (x + jnp.where(keep, y * jnp.float32(scale), 0.0)
                  ).astype(o_ref.dtype)


def residual_dropout_add(x, y, *, rate, seed=0, row_tile=None, out_dtype=None):
    orig_shape = x.shape
    d = orig_shape[-1]
    out_dtype = out_dtype or jnp.result_type(x.dtype, y.dtype)

    if rate >= 1.0:                                  # everything dropped
        return x.astype(out_dtype)

    x2d = x.reshape(-1, d)                           # native dtypes, no pre-cast
    y2d = y.reshape(-1, d)
    n = x2d.shape[0]
    itemsize = max(jnp.dtype(x.dtype).itemsize, jnp.dtype(y.dtype).itemsize,
                   jnp.dtype(out_dtype).itemsize)
    tm = row_tile or _pick_row_tile(n, d, itemsize=itemsize)
    grid = (pl.cdiv(n, tm),)
    cp = pltpu.CompilerParams(dimension_semantics=("parallel",),
                              vmem_limit_bytes=_vmem_limit_bytes())

    if rate <= 0.0:
        out = pl.pallas_call(
            _residual_add_kernel,
            out_shape=jax.ShapeDtypeStruct((n, d), out_dtype),
            grid_spec=pltpu.PrefetchScalarGridSpec(
                num_scalar_prefetch=0,
                grid=grid,
                in_specs=[pl.BlockSpec((tm, d), lambda i: (i, 0)),
                          pl.BlockSpec((tm, d), lambda i: (i, 0))],
                out_specs=pl.BlockSpec((tm, d), lambda i: (i, 0)),
            ),
            compiler_params=cp,
        )(x2d, y2d)
    else:
        threshold = min(int(round(float(rate) * 2.0 ** 32)), 2 ** 32 - 1)
        scale = 1.0 / (1.0 - float(rate))
        seed_arr = jnp.asarray([seed], jnp.int32)
        out = pl.pallas_call(
            functools.partial(_residual_dropout_kernel, threshold=threshold,
                              scale=scale, d_total=d),
            out_shape=jax.ShapeDtypeStruct((n, d), out_dtype),
            grid_spec=pltpu.PrefetchScalarGridSpec(
                num_scalar_prefetch=1,               # seed -> SMEM
                grid=grid,
                in_specs=[pl.BlockSpec((tm, d), lambda i, s: (i, 0)),
                          pl.BlockSpec((tm, d), lambda i, s: (i, 0))],
                out_specs=pl.BlockSpec((tm, d), lambda i, s: (i, 0)),
            ),
            compiler_params=cp,
        )(seed_arr, x2d, y2d)
    return out.reshape(orig_shape)


# ----------------------------------------------------------------------------
# ResidualConnection forward
# ----------------------------------------------------------------------------

def residual_connection(x, sub_layer, *, alpha, bias, dropout_rate=0.1,
                        epsilon=1e-6, seed=0, deterministic=False,
                        row_tile=None, ln_dtype=jnp.float32, out_dtype=None):
    """Pallas equivalent of:  x + dropout(sub_layer(layer_norm(x)))."""
    normed = layer_normalisation(x, alpha, bias, epsilon=epsilon,
                                 row_tile=row_tile, out_dtype=ln_dtype)
    # TODO(synk): sub_layer is an arbitrary user callable (attention / FFN
    # block); it runs as plain JAX between the two fused Pallas kernels and
    # cannot be fused generically.
    y = sub_layer(normed)
    rate = 0.0 if deterministic else float(dropout_rate)
    return residual_dropout_add(x, y, rate=rate, seed=seed, row_tile=row_tile,
                                out_dtype=out_dtype)


# ----------------------------------------------------------------------------
# Demo / self-check
# ----------------------------------------------------------------------------

if __name__ == "__main__":
    key = jax.random.PRNGKey(0)
    kx, kw, kb = jax.random.split(key, 3)

    batch, seq, d_model = 2, 8, 32
    x = jax.random.normal(kx, (batch, seq, d_model), jnp.float32)

    # LayerNormalisation parameters (scalar alpha / bias, as in the module).
    alpha = jnp.ones((1,), jnp.float32)
    bias = jnp.zeros((1,), jnp.float32)

    # A simple sub-layer (small linear block) standing in for attention / FFN.
    w = jax.random.normal(kw, (d_model, d_model), jnp.float32) / (d_model ** 0.5)
    b = 0.01 * jax.random.normal(kb, (d_model,), jnp.float32)

    def sub_layer(h):
        return h @ w + b

    # ---- deterministic path (dropout disabled): exact reference check -------
    out_eval = residual_connection(x, sub_layer, alpha=alpha, bias=bias,
                                   dropout_rate=0.1, deterministic=True)
    out_eval = jax.block_until_ready(out_eval)

    xf = x.astype(jnp.float32)
    mean = xf.mean(-1, keepdims=True)
    std = jnp.std(xf, axis=-1, keepdims=True, ddof=1)      # torch.std (unbiased)
    normed_ref = alpha[0] * (xf - mean) / (std + 1e-6) + bias[0]
    ref = x + sub_layer(normed_ref)

    assert out_eval.shape == x.shape
    assert jnp.allclose(out_eval, ref, atol=1e-5, rtol=1e-5)

    # ---- training path (dropout active): every element of (out - x) must be
    # either 0 (dropped) or the sub-layer output scaled by 1/(1-p). -----------
    p = 0.5
    out_train = residual_connection(x, sub_layer, alpha=alpha, bias=bias,
                                    dropout_rate=p, deterministic=False,
                                    seed=123)
    out_train = jax.block_until_ready(out_train)

    delta = out_train - x
    scaled = sub_layer(normed_ref) / (1.0 - p)
    is_zero = jnp.abs(delta) <= 1e-6
    is_kept = jnp.abs(delta - scaled) <= 1e-4 * (1.0 + jnp.abs(scaled))
    assert bool(jnp.all(is_zero | is_kept))
    keep_frac = float(jnp.mean(is_kept.astype(jnp.float32)))
    assert 0.2 < keep_frac < 0.8   # ~Bernoulli(1-p) over 512 elements

    print("KERNEL_OK")
</pallas_src>

<mosaic_0001>
module attributes {stable_mosaic.version = 11 : i64} {
  func.func @_layernorm_kernel(%arg0: i32, %arg1: memref<2xf32, #tpu.memory_space<smem>>, %arg2: memref<16x32xf32, #tpu.memory_space<vmem>>, %arg3: memref<16x32xf32, #tpu.memory_space<vmem>>) attributes {dimension_semantics = [#tpu.dimension_semantics<parallel>], iteration_bounds = array<i64: 1>, scalar_prefetch = 1 : i64, scratch_operands = 0 : i64, tpu.core_type = #tpu.core_type<tc>, window_params = [{transform_indices = @transform_0, window_bounds = array<i64: 16, 32>}, {transform_indices = @transform_1, window_bounds = array<i64: 16, 32>}]} {
    %c0 = arith.constant 0 : index
    %c0_0 = arith.constant 0 : index
    %0 = vector.load %arg2[%c0, %c0_0] : memref<16x32xf32, #tpu.memory_space<vmem>>, vector<16x32xf32>
    %cst = arith.constant dense<0.000000e+00> : vector<16xf32>
    %1 = vector.multi_reduction <add>, %0, %cst [1] : vector<16x32xf32> to vector<16xf32>
    %2 = vector.shape_cast %1 : vector<16xf32> to vector<16x1xf32>
    %cst_1 = arith.constant 3.200000e+01 : f32
    %3 = vector.broadcast %cst_1 : f32 to vector<16x1xf32>
    %4 = arith.divf %2, %3 : vector<16x1xf32>
    %5 = vector.broadcast %4 : vector<16x1xf32> to vector<16x32xf32>
    %6 = arith.subf %0, %5 : vector<16x32xf32>
    %7 = arith.mulf %6, %6 : vector<16x32xf32>
    %cst_2 = arith.constant dense<0.000000e+00> : vector<16xf32>
    %8 = vector.multi_reduction <add>, %7, %cst_2 [1] : vector<16x32xf32> to vector<16xf32>
    %9 = vector.shape_cast %8 : vector<16xf32> to vector<16x1xf32>
    %cst_3 = arith.constant 0.0322580636 : f32
    %10 = vector.broadcast %cst_3 : f32 to vector<16x1xf32>
    %11 = arith.mulf %9, %10 : vector<16x1xf32>
    %12 = math.sqrt %11 : vector<16x1xf32>
    %c0_4 = arith.constant 0 : index
    %13 = memref.load %arg1[%c0_4] : memref<2xf32, #tpu.memory_space<smem>>
    %cst_5 = arith.constant 9.99999997E-7 : f32
    %14 = vector.broadcast %cst_5 : f32 to vector<16x1xf32>
    %15 = arith.addf %12, %14 : vector<16x1xf32>
    %16 = vector.broadcast %13 : f32 to vector<16x1xf32>
    %17 = arith.divf %16, %15 : vector<16x1xf32>
    %18 = vector.broadcast %17 : vector<16x1xf32> to vector<16x32xf32>
    %19 = arith.mulf %6, %18 : vector<16x32xf32>
    %c1 = arith.constant 1 : index
    %20 = memref.load %arg1[%c1] : memref<2xf32, #tpu.memory_space<smem>>
    %21 = vector.broadcast %20 : f32 to vector<16x32xf32>
    %22 = arith.addf %19, %21 : vector<16x32xf32>
    %c0_6 = arith.constant 0 : index
    %c0_7 = arith.constant 0 : index
    %23 = vector.load %arg3[%c0_6, %c0_7] : memref<16x32xf32, #tpu.memory_space<vmem>>, vector<16x32xf32>
    tpu.vector_store %arg3[%c0_6, %c0_7], %22 {strides = array<i32>} : memref<16x32xf32, #tpu.memory_space<vmem>>, vector<16x32xf32>,
    return
  }
  func.func @transform_0(%arg0: i32, %arg1: memref<2xf32, #tpu.memory_space<smem>>) -> (i32, i32) {
    %c0_i32 = arith.constant 0 : i32
    %c0_i32_0 = arith.constant 0 : i32
    return %arg0, %c0_i32 : i32, i32
  }
  func.func @transform_1(%arg0: i32, %arg1: memref<2xf32, #tpu.memory_space<smem>>) -> (i32, i32) {
    %c0_i32 = arith.constant 0 : i32
    %c0_i32_0 = arith.constant 0 : i32
    return %arg0, %c0_i32 : i32, i32
  }
}

</mosaic_0001>

<llo_original>
// kernel: tpu_custom_call.1
$region0: #{tpu_custom_call.1}
  #allocation0 [shape = 'u32[]', space=smem, size = 0x4, offset = 0x4, fixed_abs, tag = 'smem constant byte address 0x4 - core index']
  #allocation1 [shape = 'u32[144,128]{1,0:T(1,128)}', space=vmem, size = 0x12000, scoped, tag = 'internal scratch']
  #allocation2 [shape = 's32[1]{0}', space=sflag, size = 0x4, scoped, tag = 'scoped memory for tpu_custom_call.1']
  #allocation3 [shape = 'u8[512]{0}', space=smem, size = 0x200, scoped, tag = 'prefetched SMEM operand 0']
  %s0 = inlined_call_operand.hbm [shape: f32[2], index: 0, kind: input, shape index: {}]
  %s1 = inlined_call_operand.hbm [shape: f32[16,32], index: 1, kind: input, shape index: {}]
  %s2 = inlined_call_operand.hbm [shape: f32[16,32], index: 2, kind: output, shape index: {}]
  %s3 = sld [smem:[#allocation0]]
  $region18: #{tpu_custom_call.1} parent=0
    _
  %s5 = ssub.s32 1, %s3
  %s6 = scalar_select 0, %s5, %s3
  %8 = dma.hbm_to_smem %s0, 16, [#allocation3], [#allocation2]
  %9 = dma.done [#allocation2], 16
  %10 = sfence
  $region1: #{tpu_custom_call.1} parent=0
    #allocation4 [shape = 'u8[8192]{0}', space=vmem, size = 0x2000, scoped, tag = 'input window, operand 1, single buffered']
    #allocation5 [shape = 's32[1]{0}', space=sflag, size = 0x4, scoped, tag = 'scoped memory for tpu_custom_call.1']
    #allocation6 [shape = 's32[1]{0}', space=sflag, size = 0x4, scoped, tag = 'scoped memory for tpu_custom_call.1']
    #allocation7 [shape = 'u8[8192]{0}', space=vmem, size = 0x2000, scoped, tag = 'output window, operand 0, single buffered']
    %11 = vsyncpa [#allocation5], 0
    %12 = vsyncpa [#allocation6], 0
    // Predicated region
    $region2: #{tpu_custom_call.1} parent=1 // pred_check
      _
    $region3: #{tpu_custom_call.1} parent=1 // pred_check_branch
      %14 = sbr.rel (0) target = $region5
    $region4: #{tpu_custom_call.1} parent=1 // pred_region
      %s16 = ssub.s32 256, 256
      %17 = vsyncadd [#allocation5], %s16
      %s18 = sshll.u32 [#allocation4], 4
      %s19 = int_to_ptr.vmem [resolvable:$true] %s18
      %24 = dma.hbm_to_vmem [thread:$0]  %s1, 256, %s19, [#allocation5], 128, 128, 8
    $region5: #{tpu_custom_call.1} parent=1 // pred_fallthru
      _
    // Predicated region
    $region6: #{tpu_custom_call.1} parent=1 // pred_check
      _
    $region7: #{tpu_custom_call.1} parent=1 // pred_check_branch
      %26 = sbr.rel (0) target = $region9
    $region8: #{tpu_custom_call.1} parent=1 // pred_region
      %27 = dma.done [#allocation5], 256
    $region9: #{tpu_custom_call.1} parent=1 // pred_fallthru
      _
    %v28 = vld [vmem:[#allocation4] sm:$0xff]
    %v29 = vld [vmem:[#allocation4 + $0x8] sm:$0xff]
    %vm30 = vcmask 261120
    %v31 = vsel %vm30, %v28, 0.0
    %32 = vadd.xlane.f32.xlu0 %v31
    %v33 = vpop.xlane.xlu0 %32
    %v34 = vsel %vm30, %v29, 0.0
    %35 = vadd.xlane.f32.xlu0 %v34
    %v36 = vpop.xlane.xlu0 %35
    %v37 = vrcp.pop 32.0
    %v38 = vmul.f32 %v33, %v37
    %v39 = vmul.f32 %v36, %v37
    %v40 = vsub.f32 %v28, %v38
    %v41 = vsub.f32 %v29, %v39
    %v42 = vmul.f32 %v40, %v40
    %v43 = vmul.f32 %v41, %v41
    %v44 = vsel %vm30, %v42, 0.0
    %45 = vadd.xlane.f32.xlu0 %v44
    %v46 = vpop.xlane.xlu0 %45
    %v47 = vsel %vm30, %v43, 0.0
    %48 = vadd.xlane.f32.xlu0 %v47
    %v49 = vpop.xlane.xlu0 %48
    %v50 = vmul.f32 %v46, 0.032258064
    %v51 = vmul.f32 %v49, 0.032258064
    %v52 = vrsqrt.pop %v50
    %v53 = vmul.f32 %v50, %v52
    %vm54 = vcmp.eq.f32.partialorder %v50, inf
    %v55 = vsel %vm54, %v50, %v53
    %vm56 = vcmp.eq.f32.partialorder %v50, 0.0
    %v57 = vand.u32 %v50, 2147483648
    %v58 = vsel %vm56, %v57, %v55
    %v59 = vrsqrt.pop %v51
    %v60 = vmul.f32 %v51, %v59
    %vm61 = vcmp.eq.f32.partialorder %v51, inf
    %v62 = vsel %vm61, %v51, %v60
    %vm63 = vcmp.eq.f32.partialorder %v51, 0.0
    %v64 = vand.u32 %v51, 2147483648
    %v65 = vsel %vm63, %v64, %v62
    %s66 = sld [smem:[#allocation3]]
    %v67 = vadd.f32 %v58, 1e-06
    %v68 = vadd.f32 %v65, 1e-06
    %v69 = vstv %s66
    %v70 = vrcp.pop %v67
    %v71 = vmul.f32 %v69, %v70
    %v72 = vrcp.pop %v68
    %v73 = vmul.f32 %v69, %v72
    %v74 = vmul.f32 %v40, %v71
    %v75 = vmul.f32 %v41, %v73
    %s76 = sld [smem:[#allocation3 + $0x1]]
    %v77 = vstv %s76
    %v78 = vadd.f32 %v74, %v77
    %v79 = vadd.f32 %v75, %v77
    %80 = vst.msk [vmem:[#allocation7] sm:$0xff] %vm30, %v78
    %81 = vst.msk [vmem:[#allocation7 + $0x8] sm:$0xff] %vm30, %v79
    // Predicated region
    $region10: #{tpu_custom_call.1} parent=1 // pred_check
      _
    $region11: #{tpu_custom_call.1} parent=1 // pred_check_branch
      %83 = sbr.rel (0) target = $region13
    $region12: #{tpu_custom_call.1} parent=1 // pred_region
      %s85 = ssub.s32 256, 256
      %86 = vsyncadd [#allocation6], %s85
      %s87 = sshll.u32 [#allocation7], 4
      %s88 = int_to_ptr.vmem [resolvable:$true] %s87
      %93 = dma.vmem_to_hbm [thread:$0]  %s88, 256, %s2, [#allocation6], 128, 128, 8
    $region13: #{tpu_custom_call.1} parent=1 // pred_fallthru
      _
    // Predicated region
    $region14: #{tpu_custom_call.1} parent=1 // pred_check
      _
    $region15: #{tpu_custom_call.1} parent=1 // pred_check_branch
      %95 = sbr.rel (0) target = $region17
    $region16: #{tpu_custom_call.1} parent=1 // pred_region
      %96 = dma.done [#allocation6], 256
    $region17: #{tpu_custom_call.1} parent=1 // pred_fallthru
      _
    %97 = vsyncpa [#allocation5], 1
    %98 = vsyncpa [#allocation6], 1

</llo_original>
